<compile_context>
chip_gen: v7x
topology: tpu7x:2x2x1
jax: 0.10.0
libtpu: 0.0.40
codegen_flags: <defaults>
</compile_context>

<pallas_src>
import functools

import jax
import jax.numpy as jnp
from jax.experimental import pallas as pl
from jax.experimental.pallas import tpu as pltpu


def _actor_kernel(x_ref, w1_ref, b1_ref, w2_ref, b2_ref, w3_ref, b3_ref, o_ref):
    # Layer 1: Linear(state_dim, 256) + ReLU
    h1 = jnp.dot(x_ref[...], w1_ref[...], preferred_element_type=jnp.float32)
    h1 = jnp.maximum(h1 + b1_ref[...], 0.0)
    # Layer 2: Linear(256, 128) + ReLU
    h2 = jnp.dot(h1, w2_ref[...], preferred_element_type=jnp.float32)
    h2 = jnp.maximum(h2 + b2_ref[...], 0.0)
    # Layer 3: Linear(128, act_dim_padded) + Tanh  (padded cols see zero W/b)
    h3 = jnp.dot(h2, w3_ref[...], preferred_element_type=jnp.float32)
    o_ref[...] = jnp.tanh(h3 + b3_ref[...])


@functools.partial(jax.jit, static_argnames=("tb",))
def actor_forward(x, w1, b1, w2, b2, w3, b3, *, tb=512):
    """Fused Actor MLP forward on TPU via pallas_call.

    x: (B, state_dim) float32
    wN: (in, out) float32, bN: (1, out) float32
    returns: (B, act_dim) float32 = tanh(relu(relu(x@w1+b1)@w2+b2)@w3+b3)
    """
    B, state_dim = x.shape
    act_dim = w3.shape[1]

    # Lane-dense output: pad fc3's output features up to a multiple of 128
    # (weights/biases are tiny; padded columns are exact zeros -> tanh(0)=0,
    # sliced off below).
    n_pad = max(128, ((act_dim + 127) // 128) * 128)
    if n_pad != act_dim:
        w3 = jnp.pad(w3, ((0, 0), (0, n_pad - act_dim)))
        b3 = jnp.pad(b3, ((0, 0), (0, n_pad - act_dim)))

    # Batch tile: multiple of 8 sublanes, up to `tb` rows (default 512).
    tb_eff = min(tb, ((B + 7) // 8) * 8)
    n_tiles = pl.cdiv(B, tb_eff)
    b_out = n_tiles * tb_eff  # output rows rounded up -> every out block in bounds

    # Weights/biases: single full-array blocks, resident across the grid.
    resident = lambda a: pl.BlockSpec(a.shape, lambda i: (0,) * a.ndim)

    out = pl.pallas_call(
        _actor_kernel,
        out_shape=jax.ShapeDtypeStruct((b_out, n_pad), jnp.float32),
        grid=(n_tiles,),
        in_specs=[
            pl.BlockSpec((tb_eff, state_dim), lambda i: (i, 0)),  # x: row-tiled
            resident(w1), resident(b1),
            resident(w2), resident(b2),
            resident(w3), resident(b3),
        ],
        out_specs=pl.BlockSpec((tb_eff, n_pad), lambda i: (i, 0)),
        compiler_params=pltpu.CompilerParams(
            dimension_semantics=("parallel",),
        ),
    )(x, w1, b1, w2, b2, w3, b3)

    # NOTE: on v6e/v7x a further win is casting matmul operands to bf16 with
    # f32 accumulation; kept f32 here for exact parity with the f32 PyTorch
    # module.
    return out[:B, :act_dim]


def init_actor_params(key, state_dim, act_dim):
    """Deterministic init mirroring the PyTorch module:
    weights ~ Normal(0, 0.1); biases keep nn.Linear default U(-1/sqrt(in), 1/sqrt(in)).
    Weights are stored as (in, out) for x @ W.
    """
    ks = jax.random.split(key, 6)
    dims = [(state_dim, 256), (256, 128), (128, act_dim)]
    params = []
    for i, (fan_in, fan_out) in enumerate(dims):
        w = 0.1 * jax.random.normal(ks[2 * i], (fan_in, fan_out), dtype=jnp.float32)
        bound = 1.0 / jnp.sqrt(jnp.float32(fan_in))
        b = jax.random.uniform(ks[2 * i + 1], (1, fan_out), dtype=jnp.float32,
                               minval=-bound, maxval=bound)
        params += [w, b]
    return params


def actor_reference(x, w1, b1, w2, b2, w3, b3):
    h1 = jax.nn.relu(x @ w1 + b1)
    h2 = jax.nn.relu(h1 @ w2 + b2)
    return jnp.tanh(h2 @ w3 + b3)


if __name__ == "__main__":
    key = jax.random.PRNGKey(0)
    state_dim, act_dim, batch = 16, 4, 2
    # max_a is stored in the PyTorch module but unused in forward(); same here.

    kx, kp, kx2 = jax.random.split(key, 3)
    params = init_actor_params(kp, state_dim, act_dim)

    # Small demo batch (matches the module spec sizes).
    x = jax.random.normal(kx, (batch, state_dim), dtype=jnp.float32)
    out = jax.block_until_ready(actor_forward(x, *params))
    ref = actor_reference(x, *params)
    assert out.shape == (batch, act_dim)
    assert jnp.allclose(out, ref, atol=1e-5, rtol=1e-5)

    # Larger, non-tile-multiple batch: exercises the multi-tile grid and the
    # ragged last input tile (functional check).
    x_big = jax.random.normal(kx2, (600, state_dim), dtype=jnp.float32)
    out_big = jax.block_until_ready(actor_forward(x_big, *params))
    ref_big = actor_reference(x_big, *params)
    assert out_big.shape == (600, act_dim)
    assert jnp.allclose(out_big, ref_big, atol=1e-3, rtol=1e-3)

    print("KERNEL_OK")
</pallas_src>

<mosaic_0001>
module attributes {stable_mosaic.version = 11 : i64} {
  func.func @_actor_kernel(%arg0: i32, %arg1: memref<8x16xf32, #tpu.memory_space<vmem>>, %arg2: memref<16x256xf32, #tpu.memory_space<vmem>>, %arg3: memref<1x256xf32, #tpu.memory_space<vmem>>, %arg4: memref<256x128xf32, #tpu.memory_space<vmem>>, %arg5: memref<1x128xf32, #tpu.memory_space<vmem>>, %arg6: memref<128x128xf32, #tpu.memory_space<vmem>>, %arg7: memref<1x128xf32, #tpu.memory_space<vmem>>, %arg8: memref<8x128xf32, #tpu.memory_space<vmem>>) attributes {dimension_semantics = [#tpu.dimension_semantics<parallel>], iteration_bounds = array<i64: 1>, scalar_prefetch = 0 : i64, scratch_operands = 0 : i64, tpu.core_type = #tpu.core_type<tc>, window_params = [{transform_indices = @transform_0, window_bounds = array<i64: 8, 16>}, {pipeline_mode = #tpu.pipeline_mode<synchronous>, transform_indices = @transform_1, window_bounds = array<i64: 16, 256>}, {pipeline_mode = #tpu.pipeline_mode<synchronous>, transform_indices = @transform_2, window_bounds = array<i64: 1, 256>}, {pipeline_mode = #tpu.pipeline_mode<synchronous>, transform_indices = @transform_3, window_bounds = array<i64: 256, 128>}, {pipeline_mode = #tpu.pipeline_mode<synchronous>, transform_indices = @transform_4, window_bounds = array<i64: 1, 128>}, {pipeline_mode = #tpu.pipeline_mode<synchronous>, transform_indices = @transform_5, window_bounds = array<i64: 128, 128>}, {pipeline_mode = #tpu.pipeline_mode<synchronous>, transform_indices = @transform_6, window_bounds = array<i64: 1, 128>}, {transform_indices = @transform_7, window_bounds = array<i64: 8, 128>}]} {
    %c0 = arith.constant 0 : index
    %c0_0 = arith.constant 0 : index
    %0 = vector.load %arg1[%c0, %c0_0] : memref<8x16xf32, #tpu.memory_space<vmem>>, vector<8x16xf32>
    %c0_1 = arith.constant 0 : index
    %c0_2 = arith.constant 0 : index
    %1 = vector.load %arg2[%c0_1, %c0_2] : memref<16x256xf32, #tpu.memory_space<vmem>>, vector<16x256xf32>
    %cst = arith.constant dense<0.000000e+00> : vector<8x256xf32>
    %2 = tpu.matmul %0, %1, %cst {dimension_numbers = #tpu.dot_dimension_numbers<[1], [0], [0], [1], [0, 0, 1, 1], [], []>} : vector<8x16xf32>, vector<16x256xf32>, vector<8x256xf32> -> vector<8x256xf32>
    %c0_3 = arith.constant 0 : index
    %c0_4 = arith.constant 0 : index
    %3 = vector.load %arg3[%c0_3, %c0_4] : memref<1x256xf32, #tpu.memory_space<vmem>>, vector<1x256xf32>
    %4 = vector.broadcast %3 : vector<1x256xf32> to vector<8x256xf32>
    %5 = arith.addf %2, %4 : vector<8x256xf32>
    %cst_5 = arith.constant 0.000000e+00 : f32
    %6 = vector.broadcast %cst_5 : f32 to vector<8x256xf32>
    %7 = arith.maximumf %5, %6 : vector<8x256xf32>
    %c0_6 = arith.constant 0 : index
    %c0_7 = arith.constant 0 : index
    %8 = vector.load %arg4[%c0_6, %c0_7] : memref<256x128xf32, #tpu.memory_space<vmem>>, vector<256x128xf32>
    %cst_8 = arith.constant dense<0.000000e+00> : vector<8x128xf32>
    %9 = tpu.matmul %7, %8, %cst_8 {dimension_numbers = #tpu.dot_dimension_numbers<[1], [0], [0], [1], [0, 0, 1, 1], [], []>} : vector<8x256xf32>, vector<256x128xf32>, vector<8x128xf32> -> vector<8x128xf32>
    %c0_9 = arith.constant 0 : index
    %c0_10 = arith.constant 0 : index
    %10 = vector.load %arg5[%c0_9, %c0_10] : memref<1x128xf32, #tpu.memory_space<vmem>>, vector<1x128xf32>
    %11 = vector.broadcast %10 : vector<1x128xf32> to vector<8x128xf32>
    %12 = arith.addf %9, %11 : vector<8x128xf32>
    %cst_11 = arith.constant 0.000000e+00 : f32
    %13 = vector.broadcast %cst_11 : f32 to vector<8x128xf32>
    %14 = arith.maximumf %12, %13 : vector<8x128xf32>
    %c0_12 = arith.constant 0 : index
    %c0_13 = arith.constant 0 : index
    %15 = vector.load %arg6[%c0_12, %c0_13] : memref<128x128xf32, #tpu.memory_space<vmem>>, vector<128x128xf32>
    %cst_14 = arith.constant dense<0.000000e+00> : vector<8x128xf32>
    %16 = tpu.matmul %14, %15, %cst_14 {dimension_numbers = #tpu.dot_dimension_numbers<[1], [0], [0], [1], [0, 0, 1, 1], [], []>} : vector<8x128xf32>, vector<128x128xf32>, vector<8x128xf32> -> vector<8x128xf32>
    %c0_15 = arith.constant 0 : index
    %c0_16 = arith.constant 0 : index
    %17 = vector.load %arg7[%c0_15, %c0_16] : memref<1x128xf32, #tpu.memory_space<vmem>>, vector<1x128xf32>
    %18 = vector.broadcast %17 : vector<1x128xf32> to vector<8x128xf32>
    %19 = arith.addf %16, %18 : vector<8x128xf32>
    %20 = math.tanh %19 : vector<8x128xf32>
    %c0_17 = arith.constant 0 : index
    %c0_18 = arith.constant 0 : index
    %21 = vector.load %arg8[%c0_17, %c0_18] : memref<8x128xf32, #tpu.memory_space<vmem>>, vector<8x128xf32>
    tpu.vector_store %arg8[%c0_17, %c0_18], %20 {strides = array<i32>} : memref<8x128xf32, #tpu.memory_space<vmem>>, vector<8x128xf32>,
    return
  }
  func.func @transform_0(%arg0: i32) -> (i32, i32) {
    %c0_i32 = arith.constant 0 : i32
    %c0_i32_0 = arith.constant 0 : i32
    return %arg0, %c0_i32 : i32, i32
  }
  func.func @transform_1(%arg0: i32) -> (i32, i32) {
    %c0_i32 = arith.constant 0 : i32
    %c0_i32_0 = arith.constant 0 : i32
    %c0_i32_1 = arith.constant 0 : i32
    return %c0_i32, %c0_i32_0 : i32, i32
  }
  func.func @transform_2(%arg0: i32) -> (i32, i32) {
    %c0_i32 = arith.constant 0 : i32
    %c0_i32_0 = arith.constant 0 : i32
    %c0_i32_1 = arith.constant 0 : i32
    return %c0_i32, %c0_i32_0 : i32, i32
  }
  func.func @transform_3(%arg0: i32) -> (i32, i32) {
    %c0_i32 = arith.constant 0 : i32
    %c0_i32_0 = arith.constant 0 : i32
    %c0_i32_1 = arith.constant 0 : i32
    return %c0_i32, %c0_i32_0 : i32, i32
  }
  func.func @transform_4(%arg0: i32) -> (i32, i32) {
    %c0_i32 = arith.constant 0 : i32
    %c0_i32_0 = arith.constant 0 : i32
    %c0_i32_1 = arith.constant 0 : i32
    return %c0_i32, %c0_i32_0 : i32, i32
  }
  func.func @transform_5(%arg0: i32) -> (i32, i32) {
    %c0_i32 = arith.constant 0 : i32
    %c0_i32_0 = arith.constant 0 : i32
    %c0_i32_1 = arith.constant 0 : i32
    return %c0_i32, %c0_i32_0 : i32, i32
  }
  func.func @transform_6(%arg0: i32) -> (i32, i32) {
    %c0_i32 = arith.constant 0 : i32
    %c0_i32_0 = arith.constant 0 : i32
    %c0_i32_1 = arith.constant 0 : i32
    return %c0_i32, %c0_i32_0 : i32, i32
  }
  func.func @transform_7(%arg0: i32) -> (i32, i32) {
    %c0_i32 = arith.constant 0 : i32
    %c0_i32_0 = arith.constant 0 : i32
    return %arg0, %c0_i32 : i32, i32
  }
}

</mosaic_0001>

<llo_original>
// kernel: actor_forward.1
$region0: #{actor_forward.1}
  #allocation0 [shape = 'u32[]', space=smem, size = 0x4, offset = 0x4, fixed_abs, tag = 'smem constant byte address 0x4 - core index']
  #allocation1 [shape = 'u32[144,128]{1,0:T(1,128)}', space=vmem, size = 0x12000, scoped, tag = 'internal scratch']
  %s0 = inlined_call_operand.vmem [shape: f32[2,16], index: 0, kind: input, shape index: {}]
  %s1 = inlined_call_operand.vmem [shape: f32[16,256], index: 1, kind: input, shape index: {}]
  %s2 = inlined_call_operand.vmem [shape: f32[1,256], index: 2, kind: input, shape index: {}]
  %s3 = inlined_call_operand.vmem [shape: f32[256,128], index: 3, kind: input, shape index: {}]
  %s4 = inlined_call_operand.vmem [shape: f32[1,128], index: 4, kind: input, shape index: {}]
  %s5 = inlined_call_operand.vmem [shape: f32[128,128], index: 5, kind: input, shape index: {}]
  %s6 = inlined_call_operand.vmem [shape: f32[1,128], index: 6, kind: input, shape index: {}]
  %s7 = inlined_call_operand.vmem [shape: f32[8,128], index: 7, kind: output, shape index: {}]
  %s8 = sld [smem:[#allocation0]]
  $region38: #{actor_forward.1} parent=0
    _
  %s10 = ssub.s32 1, %s8
  %s11 = scalar_select 0, %s10, %s8
  // Predicated region
  $region2: #{actor_forward.1} parent=0 // pred_check
    _
  $region3: #{actor_forward.1} parent=0 // pred_check_branch
    %13 = sbr.rel (0) target = $region5
  $region4: #{actor_forward.1} parent=0 // pred_region
    _
  $region5: #{actor_forward.1} parent=0 // pred_fallthru
    _
  // Predicated region
  $region6: #{actor_forward.1} parent=0 // pred_check
    _
  $region7: #{actor_forward.1} parent=0 // pred_check_branch
    %15 = sbr.rel (0) target = $region9
  $region8: #{actor_forward.1} parent=0 // pred_region
    _
  $region9: #{actor_forward.1} parent=0 // pred_fallthru
    _
  // Predicated region
  $region10: #{actor_forward.1} parent=0 // pred_check
    _
  $region11: #{actor_forward.1} parent=0 // pred_check_branch
    %17 = sbr.rel (0) target = $region13
  $region12: #{actor_forward.1} parent=0 // pred_region
    _
  $region13: #{actor_forward.1} parent=0 // pred_fallthru
    _
  // Predicated region
  $region14: #{actor_forward.1} parent=0 // pred_check
    _
  $region15: #{actor_forward.1} parent=0 // pred_check_branch
    %19 = sbr.rel (0) target = $region17
  $region16: #{actor_forward.1} parent=0 // pred_region
    _
  $region17: #{actor_forward.1} parent=0 // pred_fallthru
    _
  // Predicated region
  $region18: #{actor_forward.1} parent=0 // pred_check
    _
  $region19: #{actor_forward.1} parent=0 // pred_check_branch
    %21 = sbr.rel (0) target = $region21
  $region20: #{actor_forward.1} parent=0 // pred_region
    _
  $region21: #{actor_forward.1} parent=0 // pred_fallthru
    _
  // Predicated region
  $region22: #{actor_forward.1} parent=0 // pred_check
    _
  $region23: #{actor_forward.1} parent=0 // pred_check_branch
    %23 = sbr.rel (0) target = $region25
  $region24: #{actor_forward.1} parent=0 // pred_region
    _
  $region25: #{actor_forward.1} parent=0 // pred_fallthru
    _
  // Predicated region
  $region26: #{actor_forward.1} parent=0 // pred_check
    _
  $region27: #{actor_forward.1} parent=0 // pred_check_branch
    %25 = sbr.rel (0) target = $region29
  $region28: #{actor_forward.1} parent=0 // pred_region
    _
  $region29: #{actor_forward.1} parent=0 // pred_fallthru
    _
  %v26 = vld [vmem:[%s0] sm:$0xff]
  %v27 = vld [vmem:[%s1] sm:$0xff]
  %v28 = vld [vmem:[%s1 + $0x8] sm:$0xff]
  %v29 = vld [vmem:[%s1 + $0x10] sm:$0xff]
  %v30 = vld [vmem:[%s1 + $0x18] sm:$0xff]
  %v31 = vld [vmem:[%s2] sm:$0x3]
  %v33 = vlaneseq
  %v34 = vshrl.u32 %v33, 7
  %v35 = vsub.s32 0, %v34
  %v36 = vrot.slane %v31, %v35
  %v37 = vlaneseq
  %v38 = vshrl.u32 %v37, 7
  %v39 = vsub.s32 1, %v38
  %v40 = vrot.slane %v31, %v39
  %vm43 = vcmask 130048
  %v45 = vsel %vm43, %v26, 0
  %47 = vmatprep.subr.mxu0 %v28
  %48 = vmatpush1.msra.mxu0 %v27
  %49 = vmatprep.subr.mxu0 %v30
  %50 = vmatpush1.msra.mxu0 %v29
  %51 = vmatprep.subr.mxu0 0.0
  %52 = vmatpush1.msra.mxu0 0.0
  %53 = vmatprep.subr.mxu0 0.0
  %54 = vmatpush1.msra.mxu0 0.0
  %55 = vmatprep.subr.mxu0 0.0
  %56 = vmatpush1.msra.mxu0 0.0
  %57 = vmatprep.subr.mxu0 0.0
  %58 = vmatpush1.msra.mxu0 0.0
  %59 = vmatprep.subr.mxu0 0.0
  %60 = vmatpush1.msra.mxu0 0.0
  %61 = vmatprep.subr.mxu0 0.0
  %62 = vmatpush1.msra.mxu0 0.0
  %63 = vmatprep.subr.mxu0 0.0
  %64 = vmatpush1.msra.mxu0 0.0
  %65 = vmatprep.subr.mxu0 0.0
  %66 = vmatpush1.msra.mxu0 0.0
  %67 = vmatprep.subr.mxu0 0.0
  %68 = vmatpush1.msra.mxu0 0.0
  %69 = vmatprep.subr.mxu0 0.0
  %70 = vmatpush1.msra.mxu0 0.0
  %71 = vmatprep.subr.mxu0 0.0
  %72 = vmatpush1.msra.mxu0 0.0
  %73 = vmatprep.subr.mxu0 0.0
  %74 = vmatpush1.msra.mxu0 0.0
  %75 = vmatprep.subr.mxu0 0.0
  %76 = vmatpush1.msra.mxu0 0.0
  %77 = vmatprep.subr.mxu0 0.0
  %78 = vmatpush1.msra.mxu0 0.0
  %79 = vmatprep.subr.mxu0 0.0
  %80 = vmatpush1.msra.mxu0 0.0
  %81 = vmatprep.subr.mxu0 0.0
  %82 = vmatpush1.msra.mxu0 0.0
  %83 = vmatprep.subr.mxu0 0.0
  %84 = vmatpush1.msra.mxu0 0.0
  %85 = vmatprep.subr.mxu0 0.0
  %86 = vmatpush1.msra.mxu0 0.0
  %87 = vmatprep.subr.mxu0 0.0
  %88 = vmatpush1.msra.mxu0 0.0
  %89 = vmatprep.subr.mxu0 0.0
  %90 = vmatpush1.msra.mxu0 0.0
  %91 = vmatprep.subr.mxu0 0.0
  %92 = vmatpush1.msra.mxu0 0.0
  %93 = vmatprep.subr.mxu0 0.0
  %94 = vmatpush1.msra.mxu0 0.0
  %95 = vmatprep.subr.mxu0 0.0
  %96 = vmatpush1.msra.mxu0 0.0
  %97 = vmatprep.subr.mxu0 0.0
  %98 = vmatpush1.msra.mxu0 0.0
  %99 = vmatprep.subr.mxu0 0.0
  %100 = vmatpush1.msra.mxu0 0.0
  %101 = vmatprep.subr.mxu0 0.0
  %102 = vmatpush1.msra.mxu0 0.0
  %103 = vmatprep.subr.mxu0 0.0
  %104 = vmatpush1.msra.mxu0 0.0
  %105 = vmatprep.subr.mxu0 0.0
  %106 = vmatpush1.msra.mxu0 0.0
  %107 = vmatprep.subr.mxu0 0.0
  %108 = vmatpush1.msra.mxu0 0.0
  %109 = vmatprep.subr.mxu0 0.0
  %110 = vmatpush1.msra.mxu0 0.0
  %111 = vmatprep.mubr.f32.mxu0 0.0
  %112 = vmatmul.mubr.f32.gmra.mrb[0].mxu0 %v45
  %v113 = vpop.f32.mrb[0].mxu0
  %v114 = vadd.f32 %v36, %v113
  %v115 = vpop.f32.mrb[0].mxu0
  %v116 = vadd.f32 %v40, %v115
  %117 = vdwg.mxu0
  %v118 = vmax.f32 %v114, 0.0
  %v119 = vmax.f32 %v116, 0.0
  %v120 = vld [vmem:[%s3] sm:$0xff]
  %v121 = vld [vmem:[%s3 + $0x8] sm:$0xff]
  %v122 = vld [vmem:[%s3 + $0x10] sm:$0xff]
  %v123 = vld [vmem:[%s3 + $0x18] sm:$0xff]
  %v124 = vld [vmem:[%s3 + $0x20] sm:$0xff]
  %v125 = vld [vmem:[%s3 + $0x28] sm:$0xff]
  %v126 = vld [vmem:[%s3 + $0x30] sm:$0xff]
  %v127 = vld [vmem:[%s3 + $0x38] sm:$0xff]
  %v128 = vld [vmem:[%s3 + $0x40] sm:$0xff]
  %v129 = vld [vmem:[%s3 + $0x48] sm:$0xff]
  %v130 = vld [vmem:[%s3 + $0x50] sm:$0xff]
  %v131 = vld [vmem:[%s3 + $0x58] sm:$0xff]
  %v132 = vld [vmem:[%s3 + $0x60] sm:$0xff]
  %v133 = vld [vmem:[%s3 + $0x68] sm:$0xff]
  %v134 = vld [vmem:[%s3 + $0x70] sm:$0xff]
  %v135 = vld [vmem:[%s3 + $0x78] sm:$0xff]
  %v136 = vld [vmem:[%s3 + $0x80] sm:$0xff]
  %v137 = vld [vmem:[%s3 + $0x88] sm:$0xff]
  %v138 = vld [vmem:[%s3 + $0x90] sm:$0xff]
  %v139 = vld [vmem:[%s3 + $0x98] sm:$0xff]
  %v140 = vld [vmem:[%s3 + $0xa0] sm:$0xff]
  %v141 = vld [vmem:[%s3 + $0xa8] sm:$0xff]
  %v142 = vld [vmem:[%s3 + $0xb0] sm:$0xff]
  %v143 = vld [vmem:[%s3 + $0xb8] sm:$0xff]
  %v144 = vld [vmem:[%s3 + $0xc0] sm:$0xff]
  %v145 = vld [vmem:[%s3 + $0xc8] sm:$0xff]
  %v146 = vld [vmem:[%s3 + $0xd0] sm:$0xff]
  %v147 = vld [vmem:[%s3 + $0xd8] sm:$0xff]
  %v148 = vld [vmem:[%s3 + $0xe0] sm:$0xff]
  %v149 = vld [vmem:[%s3 + $0xe8] sm:$0xff]
  %v150 = vld [vmem:[%s3 + $0xf0] sm:$0xff]
  %v151 = vld [vmem:[%s3 + $0xf8] sm:$0xff]
  %v152 = vld [vmem:[%s4] sm:$0x1]
  %v154 = vlaneseq
  %v155 = vshrl.u32 %v154, 7
  %v156 = vsub.s32 0, %v155
  %v157 = vrot.slane %v152, %v156
  %159 = vmatprep.subr.mxu0 0.0
  %160 = vmatpush1.msra.mxu0 %v120
  %161 = vmatprep.subr.mxu0 0.0
  %162 = vmatpush1.msra.mxu0 %v121
  %163 = vmatprep.subr.mxu0 0.0
  %164 = vmatpush1.msra.mxu0 %v122
  %165 = vmatprep.subr.mxu0 0.0
  %166 = vmatpush1.msra.mxu0 %v123
  %167 = vmatprep.subr.mxu0 0.0
  %168 = vmatpush1.msra.mxu0 %v124
  %169 = vmatprep.subr.mxu0 0.0
  %170 = vmatpush1.msra.mxu0 %v125
  %171 = vmatprep.subr.mxu0 0.0
  %172 = vmatpush1.msra.mxu0 %v126
  %173 = vmatprep.subr.mxu0 0.0
  %174 = vmatpush1.msra.mxu0 %v127
  %175 = vmatprep.subr.mxu0 0.0
  %176 = vmatpush1.msra.mxu0 %v128
  %177 = vmatprep.subr.mxu0 0.0
  %178 = vmatpush1.msra.mxu0 %v129
  %179 = vmatprep.subr.mxu0 0.0
  %180 = vmatpush1.msra.mxu0 %v130
  %181 = vmatprep.subr.mxu0 0.0
  %182 = vmatpush1.msra.mxu0 %v131
  %183 = vmatprep.subr.mxu0 0.0
  %184 = vmatpush1.msra.mxu0 %v132
  %185 = vmatprep.subr.mxu0 0.0
  %186 = vmatpush1.msra.mxu0 %v133
  %187 = vmatprep.subr.mxu0 0.0
  %188 = vmatpush1.msra.mxu0 %v134
  %189 = vmatprep.subr.mxu0 0.0
  %190 = vmatpush1.msra.mxu0 %v135
  %191 = vmatprep.subr.mxu0 0.0
  %192 = vmatpush1.msra.mxu0 %v136
  %193 = vmatprep.subr.mxu0 0.0
  %194 = vmatpush1.msra.mxu0 %v137
  %195 = vmatprep.subr.mxu0 0.0
  %196 = vmatpush1.msra.mxu0 %v138
  %197 = vmatprep.subr.mxu0 0.0
  %198 = vmatpush1.msra.mxu0 %v139
  %199 = vmatprep.subr.mxu0 0.0
  %200 = vmatpush1.msra.mxu0 %v140
  %201 = vmatprep.subr.mxu0 0.0
  %202 = vmatpush1.msra.mxu0 %v141
  %203 = vmatprep.subr.mxu0 0.0
  %204 = vmatpush1.msra.mxu0 %v142
  %205 = vmatprep.subr.mxu0 0.0
  %206 = vmatpush1.msra.mxu0 %v143
  %207 = vmatprep.subr.mxu0 0.0
  %208 = vmatpush1.msra.mxu0 %v144
  %209 = vmatprep.subr.mxu0 0.0
  %210 = vmatpush1.msra.mxu0 %v145
  %211 = vmatprep.subr.mxu0 0.0
  %212 = vmatpush1.msra.mxu0 %v146
  %213 = vmatprep.subr.mxu0 0.0
  %214 = vmatpush1.msra.mxu0 %v147
  %215 = vmatprep.subr.mxu0 0.0
  %216 = vmatpush1.msra.mxu0 %v148
  %217 = vmatprep.subr.mxu0 0.0
  %218 = vmatpush1.msra.mxu0 %v149
  %219 = vmatprep.subr.mxu0 0.0
  %220 = vmatpush1.msra.mxu0 %v150
  %221 = vmatprep.subr.mxu0 0.0
  %222 = vmatpush1.msra.mxu0 %v151
  %223 = vmatprep.mubr.f32.mxu0 %v119
  %224 = vmatmul.mubr.f32.gmra.mrb[0].mxu0 %v118
  %v225 = vpop.f32.mrb[0].mxu0
  %v226 = vadd.f32 %v157, %v225
  %v227 = vpop.f32.mrb[0].mxu0
  %228 = vdwg.mxu0
  %v229 = vmax.f32 %v226, 0.0
  %v230 = vld [vmem:[%s5] sm:$0xff]
  %v231 = vld [vmem:[%s5 + $0x8] sm:$0xff]
  %v232 = vld [vmem:[%s5 + $0x10] sm:$0xff]
  %v233 = vld [vmem:[%s5 + $0x18] sm:$0xff]
  %v234 = vld [vmem:[%s5 + $0x20] sm:$0xff]
  %v235 = vld [vmem:[%s5 + $0x28] sm:$0xff]
  %v236 = vld [vmem:[%s5 + $0x30] sm:$0xff]
  %v237 = vld [vmem:[%s5 + $0x38] sm:$0xff]
  %v238 = vld [vmem:[%s5 + $0x40] sm:$0xff]
  %v239 = vld [vmem:[%s5 + $0x48] sm:$0xff]
  %v240 = vld [vmem:[%s5 + $0x50] sm:$0xff]
  %v241 = vld [vmem:[%s5 + $0x58] sm:$0xff]
  %v242 = vld [vmem:[%s5 + $0x60] sm:$0xff]
  %v243 = vld [vmem:[%s5 + $0x68] sm:$0xff]
  %v244 = vld [vmem:[%s5 + $0x70] sm:$0xff]
  %v245 = vld [vmem:[%s5 + $0x78] sm:$0xff]
  %v246 = vld [vmem:[%s6] sm:$0x1]
  %v248 = vlaneseq
  %v249 = vshrl.u32 %v248, 7
  %v250 = vsub.s32 0, %v249
  %v251 = vrot.slane %v246, %v250
  %253 = vmatprep.subr.mxu0 0.0
  %254 = vmatpush1.msra.mxu0 %v230
  %255 = vmatprep.subr.mxu0 0.0
  %256 = vmatpush1.msra.mxu0 %v231
  %257 = vmatprep.subr.mxu0 0.0
  %258 = vmatpush1.msra.mxu0 %v232
  %259 = vmatprep.subr.mxu0 0.0
  %260 = vmatpush1.msra.mxu0 %v233
  %261 = vmatprep.subr.mxu0 0.0
  %262 = vmatpush1.msra.mxu0 %v234
  %263 = vmatprep.subr.mxu0 0.0
  %264 = vmatpush1.msra.mxu0 %v235
  %265 = vmatprep.subr.mxu0 0.0
  %266 = vmatpush1.msra.mxu0 %v236
  %267 = vmatprep.subr.mxu0 0.0
  %268 = vmatpush1.msra.mxu0 %v237
  %269 = vmatprep.subr.mxu0 0.0
  %270 = vmatpush1.msra.mxu0 %v238
  %271 = vmatprep.subr.mxu0 0.0
  %272 = vmatpush1.msra.mxu0 %v239
  %273 = vmatprep.subr.mxu0 0.0
  %274 = vmatpush1.msra.mxu0 %v240
  %275 = vmatprep.subr.mxu0 0.0
  %276 = vmatpush1.msra.mxu0 %v241
  %277 = vmatprep.subr.mxu0 0.0
  %278 = vmatpush1.msra.mxu0 %v242
  %279 = vmatprep.subr.mxu0 0.0
  %280 = vmatpush1.msra.mxu0 %v243
  %281 = vmatprep.subr.mxu0 0.0
  %282 = vmatpush1.msra.mxu0 %v244
  %283 = vmatprep.subr.mxu0 0.0
  %284 = vmatpush1.msra.mxu0 %v245
  %285 = vmatprep.subr.mxu0 0.0
  %286 = vmatpush1.msra.mxu0 0.0
  %287 = vmatprep.subr.mxu0 0.0
  %288 = vmatpush1.msra.mxu0 0.0
  %289 = vmatprep.subr.mxu0 0.0
  %290 = vmatpush1.msra.mxu0 0.0
  %291 = vmatprep.subr.mxu0 0.0
  %292 = vmatpush1.msra.mxu0 0.0
  %293 = vmatprep.subr.mxu0 0.0
  %294 = vmatpush1.msra.mxu0 0.0
  %295 = vmatprep.subr.mxu0 0.0
  %296 = vmatpush1.msra.mxu0 0.0
  %297 = vmatprep.subr.mxu0 0.0
  %298 = vmatpush1.msra.mxu0 0.0
  %299 = vmatprep.subr.mxu0 0.0
  %300 = vmatpush1.msra.mxu0 0.0
  %301 = vmatprep.subr.mxu0 0.0
  %302 = vmatpush1.msra.mxu0 0.0
  %303 = vmatprep.subr.mxu0 0.0
  %304 = vmatpush1.msra.mxu0 0.0
  %305 = vmatprep.subr.mxu0 0.0
  %306 = vmatpush1.msra.mxu0 0.0
  %307 = vmatprep.subr.mxu0 0.0
  %308 = vmatpush1.msra.mxu0 0.0
  %309 = vmatprep.subr.mxu0 0.0
  %310 = vmatpush1.msra.mxu0 0.0
  %311 = vmatprep.subr.mxu0 0.0
  %312 = vmatpush1.msra.mxu0 0.0
  %313 = vmatprep.subr.mxu0 0.0
  %314 = vmatpush1.msra.mxu0 0.0
  %315 = vmatprep.subr.mxu0 0.0
  %316 = vmatpush1.msra.mxu0 0.0
  %317 = vmatprep.mubr.f32.mxu0 0.0
  %318 = vmatmul.mubr.f32.gmra.mrb[0].mxu0 %v229
  %v319 = vpop.f32.mrb[0].mxu0
  %v320 = vadd.f32 %v251, %v319
  %v321 = vpop.f32.mrb[0].mxu0
  %322 = vdwg.mxu0
  %v323 = vtanh.pop %v320
  %324 = vst [vmem:[%s7] sm:$0xff] %v323
  // Predicated region
  $region30: #{actor_forward.1} parent=0 // pred_check
    _
  $region31: #{actor_forward.1} parent=0 // pred_check_branch
    %326 = sbr.rel (0) target = $region33
  $region32: #{actor_forward.1} parent=0 // pred_region
    _
  $region33: #{actor_forward.1} parent=0 // pred_fallthru
    _
  // Predicated region
  $region34: #{actor_forward.1} parent=0 // pred_check
    _
  $region35: #{actor_forward.1} parent=0 // pred_check_branch
    %328 = sbr.rel (0) target = $region37
  $region36: #{actor_forward.1} parent=0 // pred_region
    _
  $region37: #{actor_forward.1} parent=0 // pred_fallthru
    _

</llo_original>
